<compile_context>
chip_gen: v7x
topology: tpu7x:2x2x1
jax: 0.10.0
libtpu: 0.0.40
codegen_flags: <defaults>
</compile_context>

<pallas_src>
import math
import functools

import jax
import jax.numpy as jnp
from jax.experimental import pallas as pl
from jax.experimental.pallas import tpu as pltpu


# ---------------------------------------------------------------------------
# Pallas kernel (use_mean_pooling=True path — the compute path)
# ---------------------------------------------------------------------------

def _summary_pool_kernel(x_ref, consts_ref, o_ref, *, eps):
    """Processes TB batch rows per grid step.

    x_ref      : (TB, S, D)   input block
    consts_ref : (3, D)       row 0: bos_embedding + mean(pe[:S]); row 1: gamma; row 2: beta
    o_ref      : (TB, S+1, D) output block
    """
    x = x_ref[...]                                       # (TB, S, D)

    c = consts_ref[0:1, :]                               # (1, D)  bos + mean(pe)
    gamma = consts_ref[1:2, :]                           # (1, D)
    beta = consts_ref[2:3, :]                            # (1, D)

    # Mean over the sequence (sublane) axis; mean(pe[:S]) is already folded into `c`.
    pooled = jnp.mean(x.astype(jnp.float32), axis=1)     # (TB, D)
    y = pooled + c                                       # (TB, D)

    # LayerNorm over the feature dim (biased variance, eps inside rsqrt).
    mu = jnp.mean(y, axis=-1, keepdims=True)
    d = y - mu
    var = jnp.mean(d * d, axis=-1, keepdims=True)
    bos = d * jax.lax.rsqrt(var + eps) * gamma + beta    # (TB, D)

    # Direct stores — no materialized concatenate.
    o_ref[:, 0:1, :] = bos[:, None, :].astype(o_ref.dtype)
    o_ref[:, 1:, :] = x


# ---------------------------------------------------------------------------
# Wrapper
# ---------------------------------------------------------------------------

def make_positional_encoding(d_model, max_len):
    """Replicates the PositionalEncoding buffer pe: shape (max_len, d_model)."""
    position = jnp.arange(max_len, dtype=jnp.float32)[:, None]            # (L, 1)
    div_term = jnp.exp(
        jnp.arange(0, d_model, 2, dtype=jnp.float32) * -(math.log(10000.0) / d_model)
    )                                                                     # (D/2,)
    angles = position * div_term                                          # (L, D/2)
    pe = jnp.zeros((max_len, d_model), dtype=jnp.float32)
    pe = pe.at[:, 0::2].set(jnp.sin(angles))
    pe = pe.at[:, 1::2].set(jnp.cos(angles))
    return pe


def _pick_block_batch(B, S, D, itemsize, target_bytes=2 * 1024 * 1024):
    """Batch rows per grid step: ~2 MiB blocks (VMEM-safe on v5e/v6e/v7x with
    double buffering), but keep >= 2 grid steps when B >= 2 so both v7x TCs get work."""
    per_row = max(1, S * D * itemsize)
    tb = max(1, min(B, target_bytes // per_row))
    if B >= 2:
        tb = min(tb, pl.cdiv(B, 2))
    return int(tb)


def summary_encoding(x, modality_idx, params, *, use_mean_pooling, layer_norm_eps=1e-12):
    """Pallas implementation of SummaryEncoding.forward.

    x            : (B, S, D)
    modality_idx : Python int (static, as in the PyTorch call)
    params       : dict with 'bos_embeddings' (M, D), 'pe' (max_len, D),
                   'ln_gamma' (M, D), 'ln_beta' (M, D)
    returns      : (B, S+1, D)
    """
    B, S, D = x.shape
    bos_row = params["bos_embeddings"][modality_idx]                      # (D,)

    if not use_mean_pooling:
        # Pure data movement, zero compute: XLA's fused copy beats a hand-rolled
        # per-row Pallas copy (per-step overhead + narrow masked stores).
        bos = jnp.broadcast_to(bos_row[None, None, :], (B, 1, D)).astype(x.dtype)
        return jnp.concatenate([bos, x], axis=1)

    # Fold mean(pe[:S]) into the BOS row (linearity of the mean).
    mean_pe = jnp.mean(params["pe"][:S, :].astype(jnp.float32), axis=0)   # (D,)
    c = bos_row.astype(jnp.float32) + mean_pe                             # (D,)
    consts = jnp.stack(
        [c,
         params["ln_gamma"][modality_idx].astype(jnp.float32),
         params["ln_beta"][modality_idx].astype(jnp.float32)],
        axis=0,
    )                                                                     # (3, D)

    TB = _pick_block_batch(B, S, D, jnp.dtype(x.dtype).itemsize)
    grid = (pl.cdiv(B, TB),)
    kernel = functools.partial(_summary_pool_kernel, eps=layer_norm_eps)

    return pl.pallas_call(
        kernel,
        out_shape=jax.ShapeDtypeStruct((B, S + 1, D), x.dtype),
        grid=grid,
        in_specs=[
            pl.BlockSpec((TB, S, D), lambda b: (b, 0, 0)),
            pl.BlockSpec((3, D), lambda b: (0, 0)),      # grid-invariant: fetched once
        ],
        out_specs=pl.BlockSpec((TB, S + 1, D), lambda b: (b, 0, 0)),
        compiler_params=pltpu.CompilerParams(dimension_semantics=("parallel",)),
    )(x, consts)


# ---------------------------------------------------------------------------
# Pure-JAX reference (for correctness check)
# ---------------------------------------------------------------------------

def summary_encoding_ref(x, modality_idx, params, *, use_mean_pooling, layer_norm_eps=1e-12):
    B, S, D = x.shape
    bos = jnp.broadcast_to(params["bos_embeddings"][modality_idx][None, None, :], (B, 1, D))
    if use_mean_pooling:
        x_pos = x + params["pe"][None, :S, :]
        pooled = jnp.mean(x_pos, axis=1, keepdims=True)
        y = bos + pooled
        mu = jnp.mean(y, axis=-1, keepdims=True)
        var = jnp.mean((y - mu) ** 2, axis=-1, keepdims=True)
        y_hat = (y - mu) / jnp.sqrt(var + layer_norm_eps)
        bos = y_hat * params["ln_gamma"][modality_idx] + params["ln_beta"][modality_idx]
    return jnp.concatenate([bos.astype(x.dtype), x], axis=1)


# ---------------------------------------------------------------------------
# Main
# ---------------------------------------------------------------------------

if __name__ == "__main__":
    key = jax.random.PRNGKey(0)
    modalities = ("visual", "audio")
    B, S, D = 2, 8, 32
    max_len = 64
    modality_idx = 1

    k_x, k_emb = jax.random.split(key)
    x = jax.random.normal(k_x, (B, S, D), dtype=jnp.float32)

    params = {
        # nn.Embedding(len(modalities), d_model) — deterministic normal init
        "bos_embeddings": jax.random.normal(k_emb, (len(modalities), D), dtype=jnp.float32),
        # PositionalEncoding buffer
        "pe": make_positional_encoding(D, max_len),
        # nn.LayerNorm default init: weight=1, bias=0 (per modality)
        "ln_gamma": jnp.ones((len(modalities), D), dtype=jnp.float32),
        "ln_beta": jnp.zeros((len(modalities), D), dtype=jnp.float32),
    }

    # use_mean_pooling=True branch (the interesting compute path)
    out_pool = summary_encoding(x, modality_idx, params, use_mean_pooling=True)
    jax.block_until_ready(out_pool)
    ref_pool = summary_encoding_ref(x, modality_idx, params, use_mean_pooling=True)
    assert out_pool.shape == (B, S + 1, D)
    assert jnp.allclose(out_pool, ref_pool, atol=1e-5, rtol=1e-5)

    # use_mean_pooling=False branch (pure data movement; handled by XLA)
    out_plain = summary_encoding(x, modality_idx, params, use_mean_pooling=False)
    jax.block_until_ready(out_plain)
    ref_plain = summary_encoding_ref(x, modality_idx, params, use_mean_pooling=False)
    assert out_plain.shape == (B, S + 1, D)
    assert jnp.allclose(out_plain, ref_plain, atol=1e-6, rtol=1e-6)

    print("KERNEL_OK")
</pallas_src>

<mosaic_0001>
module attributes {stable_mosaic.version = 11 : i64} {
  func.func @_summary_pool_kernel(%arg0: i32, %arg1: memref<1x8x32xf32, #tpu.memory_space<vmem>>, %arg2: memref<3x32xf32, #tpu.memory_space<vmem>>, %arg3: memref<1x9x32xf32, #tpu.memory_space<vmem>>) attributes {dimension_semantics = [#tpu.dimension_semantics<parallel>], iteration_bounds = array<i64: 2>, scalar_prefetch = 0 : i64, scratch_operands = 0 : i64, tpu.core_type = #tpu.core_type<tc>, window_params = [{transform_indices = @transform_0, window_bounds = array<i64: 1, 8, 32>}, {pipeline_mode = #tpu.pipeline_mode<synchronous>, transform_indices = @transform_1, window_bounds = array<i64: 3, 32>}, {transform_indices = @transform_2, window_bounds = array<i64: 1, 9, 32>}]} {
    %c0 = arith.constant 0 : index
    %c0_0 = arith.constant 0 : index
    %c0_1 = arith.constant 0 : index
    %0 = vector.load %arg1[%c0, %c0_0, %c0_1] : memref<1x8x32xf32, #tpu.memory_space<vmem>>, vector<1x8x32xf32>
    %c0_2 = arith.constant 0 : index
    %c0_3 = arith.constant 0 : index
    %1 = vector.load %arg2[%c0_2, %c0_3] : memref<3x32xf32, #tpu.memory_space<vmem>>, vector<1x32xf32>
    %c1 = arith.constant 1 : index
    %c0_4 = arith.constant 0 : index
    %2 = vector.load %arg2[%c1, %c0_4] : memref<3x32xf32, #tpu.memory_space<vmem>>, vector<1x32xf32>
    %c2 = arith.constant 2 : index
    %c0_5 = arith.constant 0 : index
    %3 = vector.load %arg2[%c2, %c0_5] : memref<3x32xf32, #tpu.memory_space<vmem>>, vector<1x32xf32>
    %cst = arith.constant dense<0.000000e+00> : vector<1x32xf32>
    %4 = vector.multi_reduction <add>, %0, %cst [1] : vector<1x8x32xf32> to vector<1x32xf32>
    %cst_6 = arith.constant 8.000000e+00 : f32
    %5 = vector.broadcast %cst_6 : f32 to vector<1x32xf32>
    %6 = arith.divf %4, %5 : vector<1x32xf32>
    %7 = arith.addf %6, %1 : vector<1x32xf32>
    %cst_7 = arith.constant dense<0.000000e+00> : vector<1xf32>
    %8 = vector.multi_reduction <add>, %7, %cst_7 [1] : vector<1x32xf32> to vector<1xf32>
    %9 = vector.shape_cast %8 : vector<1xf32> to vector<1x1xf32>
    %cst_8 = arith.constant 3.200000e+01 : f32
    %10 = vector.broadcast %cst_8 : f32 to vector<1x1xf32>
    %11 = arith.divf %9, %10 : vector<1x1xf32>
    %12 = vector.broadcast %11 : vector<1x1xf32> to vector<1x32xf32>
    %13 = arith.subf %7, %12 : vector<1x32xf32>
    %14 = arith.mulf %13, %13 : vector<1x32xf32>
    %cst_9 = arith.constant dense<0.000000e+00> : vector<1xf32>
    %15 = vector.multi_reduction <add>, %14, %cst_9 [1] : vector<1x32xf32> to vector<1xf32>
    %16 = vector.shape_cast %15 : vector<1xf32> to vector<1x1xf32>
    %cst_10 = arith.constant 3.200000e+01 : f32
    %17 = vector.broadcast %cst_10 : f32 to vector<1x1xf32>
    %18 = arith.divf %16, %17 : vector<1x1xf32>
    %cst_11 = arith.constant 9.99999996E-13 : f32
    %19 = vector.broadcast %cst_11 : f32 to vector<1x1xf32>
    %20 = arith.addf %18, %19 : vector<1x1xf32>
    %21 = math.rsqrt %20 : vector<1x1xf32>
    %22 = vector.broadcast %21 : vector<1x1xf32> to vector<1x32xf32>
    %23 = arith.mulf %13, %22 : vector<1x32xf32>
    %24 = arith.mulf %23, %2 : vector<1x32xf32>
    %25 = arith.addf %24, %3 : vector<1x32xf32>
    %26 = vector.shape_cast %25 : vector<1x32xf32> to vector<1x1x32xf32>
    %c0_12 = arith.constant 0 : index
    %c0_13 = arith.constant 0 : index
    %c0_14 = arith.constant 0 : index
    %27 = vector.load %arg3[%c0_12, %c0_13, %c0_14] : memref<1x9x32xf32, #tpu.memory_space<vmem>>, vector<1x1x32xf32>
    tpu.vector_store %arg3[%c0_12, %c0_13, %c0_14], %26 {strides = array<i32>} : memref<1x9x32xf32, #tpu.memory_space<vmem>>, vector<1x1x32xf32>,
    %c0_15 = arith.constant 0 : index
    %c1_16 = arith.constant 1 : index
    %c0_17 = arith.constant 0 : index
    %28 = vector.load %arg3[%c0_15, %c1_16, %c0_17] : memref<1x9x32xf32, #tpu.memory_space<vmem>>, vector<1x8x32xf32>
    tpu.vector_store %arg3[%c0_15, %c1_16, %c0_17], %0 {strides = array<i32>} : memref<1x9x32xf32, #tpu.memory_space<vmem>>, vector<1x8x32xf32>,
    return
  }
  func.func @transform_0(%arg0: i32) -> (i32, i32, i32) {
    %c0_i32 = arith.constant 0 : i32
    %c0_i32_0 = arith.constant 0 : i32
    %c0_i32_1 = arith.constant 0 : i32
    return %arg0, %c0_i32, %c0_i32_0 : i32, i32, i32
  }
  func.func @transform_1(%arg0: i32) -> (i32, i32) {
    %c0_i32 = arith.constant 0 : i32
    %c0_i32_0 = arith.constant 0 : i32
    %c0_i32_1 = arith.constant 0 : i32
    return %c0_i32, %c0_i32_0 : i32, i32
  }
  func.func @transform_2(%arg0: i32) -> (i32, i32, i32) {
    %c0_i32 = arith.constant 0 : i32
    %c0_i32_0 = arith.constant 0 : i32
    %c0_i32_1 = arith.constant 0 : i32
    return %arg0, %c0_i32, %c0_i32_0 : i32, i32, i32
  }
}

</mosaic_0001>

<llo_original>
// kernel: tpu_custom_call.1
$region0: #{tpu_custom_call.1}
  #allocation0 [shape = 'u32[]', space=smem, size = 0x4, offset = 0x4, fixed_abs, tag = 'smem constant byte address 0x4 - core index']
  #allocation1 [shape = 'u32[144,128]{1,0:T(1,128)}', space=vmem, size = 0x12000, scoped, tag = 'internal scratch']
  %s0 = inlined_call_operand.hbm [shape: f32[2,8,32], index: 0, kind: input, shape index: {}]
  %s1 = inlined_call_operand.hbm [shape: f32[3,32], index: 1, kind: input, shape index: {}]
  %s2 = inlined_call_operand.vmem [shape: f32[2,9,32], index: 2, kind: output, shape index: {}]
  %s3 = sld [smem:[#allocation0]]
  $region49: #{tpu_custom_call.1} parent=0
    _
  %s5 = ssub.s32 1, %s3
  %s6 = scalar_select 0, %s5, %s3
  $region1: #{tpu_custom_call.1} parent=0
    #allocation2 [shape = 'u8[8192]{0}', space=vmem, size = 0x2000, scoped, tag = 'input window, operand 0']
    #allocation3 [shape = 's32[2]{0}', space=sflag, size = 0x8, scoped, tag = 'scoped memory for tpu_custom_call.1']
    #allocation4 [shape = 'u8[2048]{0}', space=vmem, size = 0x800, scoped, tag = 'input window, operand 1, single buffered']
    #allocation5 [shape = 's32[1]{0}', space=sflag, size = 0x4, scoped, tag = 'scoped memory for tpu_custom_call.1']
    %7 = vsyncpa [#allocation3], 0
    %s8 = scalar_lea.sflag [#allocation3], 1
    %9 = vsyncpa %s8, 0
    %10 = vsyncpa [#allocation5], 0
    loop: start=0, step=1, limit=4
    $region2: #{tpu_custom_call.1} parent=1 // loop_pre_header
      _
    $region3: #{tpu_custom_call.1} parent=1 // loop_header
      %s12 = sphi 0, %s16
      %p13 = scmp.ge.s32.totalorder %s12, 4
      %s22 = sphi 0, %s24
      %s25 = sphi 0, %s22
      %s26 = sphi 0, %s25
      %s42 = sphi 0, %s26
      %s46 = sphi 0, %s46
      %s48 = sphi 0, %s46
      %s49 = sphi 0, %s48
      %s63 = sphi 0, %s49
      %s69 = sphi 0, %s71
      %s72 = sphi 0, %s69
      %s73 = sphi 0, %s72
      %s89 = sphi 0, %s73
    $region4: #{tpu_custom_call.1} parent=1 // loop_header_branch
      %15 = sbr.rel (%p13) target = $region8
    $region5: #{tpu_custom_call.1} parent=1 // loop_body
      %s17 = ssub.s32 %s12, 1
      %s18 = ssub.s32 %s12, 2
      %s19 = sadd.s32 %s12, 1
      %s20 = ssub.s32 %s12, %s19
      %p21 = scmp.eq.s32.totalorder %s20, 0
      %s23 = sadd.s32 %s22, 1
      %s24 = scalar_select %p21, %s22, %s23
      %p27 = pneg %p21
      %p28 = scmp.eq.s32.totalorder %s12, 1
      %p29 = por %p27, %p28
      %p30 = scmp.ne.s32.totalorder %s22, %s25
      %p31 = scmp.eq.s32.totalorder %s12, 0
      %p32 = por %p30, %p31
      %p33 = scmp.ne.s32.totalorder %s22, %s25
      %p34 = scmp.eq.s32.totalorder %s17, 1
      %p35 = por %p33, %p34
      %p36 = scmp.ne.s32.totalorder %s25, %s26
      %p37 = scmp.eq.s32.totalorder %s17, 0
      %p38 = por %p36, %p37
      %p39 = scmp.ne.s32.totalorder %s25, %s26
      %p40 = scmp.eq.s32.totalorder %s18, 1
      %p41 = por %p39, %p40
      %p43 = scmp.ne.s32.totalorder %s26, %s42
      %p44 = scmp.eq.s32.totalorder %s18, 0
      %p45 = por %p43, %p44
      %s47 = sadd.s32 %s46, 1
      %p50 = scmp.eq.s32.totalorder %s12, 1
      %p51 = scmp.ne.s32.totalorder %s46, %s48
      %p52 = scmp.eq.s32.totalorder %s12, 0
      %p53 = por %p51, %p52
      %p54 = scmp.ne.s32.totalorder %s46, %s48
      %p55 = scmp.eq.s32.totalorder %s17, 1
      %p56 = por %p54, %p55
      %p57 = scmp.ne.s32.totalorder %s48, %s49
      %p58 = scmp.eq.s32.totalorder %s17, 0
      %p59 = por %p57, %p58
      %p60 = scmp.ne.s32.totalorder %s48, %s49
      %p61 = scmp.eq.s32.totalorder %s18, 1
      %p62 = por %p60, %p61
      %p64 = scmp.ne.s32.totalorder %s49, %s63
      %p65 = scmp.eq.s32.totalorder %s18, 0
      %p66 = por %p64, %p65
      %s67 = ssub.s32 %s12, %s19
      %p68 = scmp.eq.s32.totalorder %s67, 0
      %s70 = sadd.s32 %s69, 1
      %s71 = scalar_select %p68, %s69, %s70
      %p74 = pneg %p68
      %p75 = scmp.eq.s32.totalorder %s12, 1
      %p76 = por %p74, %p75
      %p77 = scmp.ne.s32.totalorder %s69, %s72
      %p78 = scmp.eq.s32.totalorder %s12, 0
      %p79 = por %p77, %p78
      %p80 = scmp.ne.s32.totalorder %s69, %s72
      %p81 = scmp.eq.s32.totalorder %s17, 1
      %p82 = por %p80, %p81
      %p83 = scmp.ne.s32.totalorder %s72, %s73
      %p84 = scmp.eq.s32.totalorder %s17, 0
      %p85 = por %p83, %p84
      %p86 = scmp.ne.s32.totalorder %s72, %s73
      %p87 = scmp.eq.s32.totalorder %s18, 1
      %p88 = por %p86, %p87
      %p90 = scmp.ne.s32.totalorder %s73, %s89
      %p91 = scmp.eq.s32.totalorder %s18, 0
      %p92 = por %p90, %p91
      %p93 = scmp.le.s32.totalorder 1, %s12
      %p94 = scmp.lt.s32.totalorder %s12, 3
      %p95 = pnand %p93, %p94
      %p96 = pneg %p95
      // Predicated region
      $region9: #{tpu_custom_call.1} parent=5 // pred_check
        _
      $region10: #{tpu_custom_call.1} parent=5 // pred_check_branch
        %98 = sbr.rel (%p95) target = $region12
      $region11: #{tpu_custom_call.1} parent=5 // pred_region
        %s99 = ssub.s32 %s12, 1
        // Predicated region
        $region13: #{tpu_custom_call.1} parent=11 // pred_check
          %p100 = pneg %p59
        $region14: #{tpu_custom_call.1} parent=11 // pred_check_branch
          %102 = sbr.rel (%p100) target = $region16
        $region15: #{tpu_custom_call.1} parent=11 // pred_region
          %s104 = ssub.s32 64, 64
          %105 = vsyncadd [#allocation5], %s104
          %s107 = sshll.u32 [#allocation4], 4
          %s108 = int_to_ptr.vmem [resolvable:$true] %s107
          %110 = dma.hbm_to_vmem [thread:$0]  %s1, 64, %s108, [#allocation5]
        $region16: #{tpu_custom_call.1} parent=11 // pred_fallthru
          _
      $region12: #{tpu_custom_call.1} parent=5 // pred_fallthru
        _
      %p111 = scmp.lt.s32.totalorder %s12, 2
      // Predicated region
      $region17: #{tpu_custom_call.1} parent=5 // pred_check
        %p112 = pneg %p111
      $region18: #{tpu_custom_call.1} parent=5 // pred_check_branch
        %114 = sbr.rel (%p112) target = $region20
      $region19: #{tpu_custom_call.1} parent=5 // pred_region
        // Predicated region
        $region21: #{tpu_custom_call.1} parent=19 // pred_check
          %p115 = pneg %p32
        $region22: #{tpu_custom_call.1} parent=19 // pred_check_branch
          %117 = sbr.rel (%p115) target = $region24
        $region23: #{tpu_custom_call.1} parent=19 // pred_region
          %s118 = sand.u32 %s22, 1
          %s119 = scalar_lea.sflag [#allocation3], %s118
          %s120 = sand.u32 %s22, 1
          %s121 = smul.addr %s120, 8
          %s122 = scalar_lea.vmem [#allocation2], %s121
          %s124 = ssub.s32 128, 128
          %125 = vsyncadd %s119, %s124
          %s126 = smul.addr %s12, 128
          %s127 = scalar_lea.hbm %s0, %s126
          %s129 = sshll.u32 %s122, 4
          %s130 = int_to_ptr.vmem [resolvable:$true] %s129
          %132 = dma.hbm_to_vmem [thread:$0]  %s127, 128, %s130, %s119
        $region24: #{tpu_custom_call.1} parent=19 // pred_fallthru
          _
      $region20: #{tpu_custom_call.1} parent=5 // pred_fallthru
        _
      %p133 = scmp.le.s32.totalorder 1, %s12
      %p134 = scmp.lt.s32.totalorder %s12, 3
      %p135 = pnand %p133, %p134
      %p136 = pneg %p135
      // Predicated region
      $region25: #{tpu_custom_call.1} parent=5 // pred_check
        _
      $region26: #{tpu_custom_call.1} parent=5 // pred_check_branch
        %138 = sbr.rel (%p135) target = $region28
      $region27: #{tpu_custom_call.1} parent=5 // pred_region
        %s139 = ssub.s32 %s12, 1
        %s140 = sand.u32 %s25, 1
        %s141 = scalar_lea.sflag [#allocation3], %s140
        %s142 = sand.u32 %s25, 1
        %s143 = smul.addr %s142, 8
        %s144 = scalar_lea.vmem [#allocation2], %s143
        // Predicated region
        $region29: #{tpu_custom_call.1} parent=27 // pred_check
          %p145 = pneg %p38
        $region30: #{tpu_custom_call.1} parent=27 // pred_check_branch
          %147 = sbr.rel (%p145) target = $region32
        $region31: #{tpu_custom_call.1} parent=27 // pred_region
          %148 = dma.done %s141, 128
        $region32: #{tpu_custom_call.1} parent=27 // pred_fallthru
          _
        // Predicated region
        $region33: #{tpu_custom_call.1} parent=27 // pred_check
          %p149 = pneg %p59
        $region34: #{tpu_custom_call.1} parent=27 // pred_check_branch
          %151 = sbr.rel (%p149) target = $region36
        $region35: #{tpu_custom_call.1} parent=27 // pred_region
          %152 = dma.done [#allocation5], 64
        $region36: #{tpu_custom_call.1} parent=27 // pred_fallthru
          _
        %s153 = sand.u32 %s25, 1
        %s154 = scalar_lea.sflag [#allocation3], %s153
        %s155 = sand.u32 %s25, 1
        %s156 = smul.addr %s155, 8
        %s157 = scalar_lea.vmem [#allocation2], %s156
        %p158 = pneg %p38
        %p159 = pneg %p35
        %p160 = pneg %p59
        %p161 = pneg %p56
        %p162 = pneg %p85
        %p163 = pneg %p82
        %p164 = scmp.lt.s32.totalorder %s17, 1
        %s165 = scalar_select %p164, %s17, 1
        %s166 = smul.addr %s165, 2
        %s167 = smul.addr %s166, 8
        %s168 = scalar_lea.vmem %s2, %s167
        %p169 = scmp.lt.s32.totalorder %s17, 1
        %s170 = scalar_select %p169, %s17, 1
        %s171 = smul.addr %s170, 2
        %s172 = smul.addr %s171, 8
        %s173 = scalar_lea.vmem %s2, %s172
        %v174 = vld [vmem:[%s144] sm:$0xff]
        %v175 = vld [vmem:[#allocation4] sm:$0x1]
        %v176 = vld [vmem:[#allocation4 + $0x1] sm:$0x1]
        %v177 = vld [vmem:[#allocation4 + $0x2] sm:$0x1]
        %vm178 = vcmask 261120
        %v179 = vsel %vm178, %v174, 0.0
        %v180 = vrot.slane %v179, 4
        %v181 = vadd.f32 %v179, %v180
        %v182 = vrot.slane %v181, 2
        %v183 = vadd.f32 %v181, %v182
        %v184 = vrot.slane %v183, 1
        %v185 = vadd.f32 %v183, %v184
        %v186 = vrcp.pop 8.0
        %v187 = vmul.f32 %v185, %v186
        %v188 = vadd.f32 %v187, %v175
        %vm189 = vcmask 253952
        %v190 = vsel %vm189, %v188, 0.0
        %191 = vadd.xlane.f32.xlu0 %v190
        %v192 = vpop.xlane.xlu0 %191
        %v193 = vrcp.pop 32.0
        %v194 = vmul.f32 %v192, %v193
        %v195 = vsub.f32 %v188, %v194
        %v196 = vmul.f32 %v195, %v195
        %v197 = vsel %vm189, %v196, 0.0
        %198 = vadd.xlane.f32.xlu0 %v197
        %v199 = vpop.xlane.xlu0 %198
        %v200 = vmul.f32 %v199, %v193
        %v201 = vadd.f32 %v200, 1e-12
        %v202 = vrsqrt.pop %v201
        %v203 = vmul.f32 %v195, %v202
        %v204 = vmul.f32 %v203, %v176
        %v205 = vadd.f32 %v204, %v177
        %206 = vst.msk [vmem:[%s173] sm:$0x1] %vm189, %v205
        %207 = vst.msk [vmem:[%s173 + $0x1] sm:$0xff] %vm178, %v174
        %p208 = scmp.lt.s32.totalorder %s17, 1
        %s209 = scalar_select %p208, %s17, 1
        %s210 = smul.addr %s209, 2
        %s211 = smul.addr %s210, 8
        %s212 = scalar_lea.vmem %s2, %s211
        // Predicated region
        $region37: #{tpu_custom_call.1} parent=27 // pred_check
          %p213 = pneg %p82
        $region38: #{tpu_custom_call.1} parent=27 // pred_check_branch
          %215 = sbr.rel (%p213) target = $region40
        $region39: #{tpu_custom_call.1} parent=27 // pred_region
          _
        $region40: #{tpu_custom_call.1} parent=27 // pred_fallthru
          _
      $region28: #{tpu_custom_call.1} parent=5 // pred_fallthru
        _
      %p216 = scmp.le.s32.totalorder 2, %s12
      // Predicated region
      $region41: #{tpu_custom_call.1} parent=5 // pred_check
        %p217 = pneg %p216
      $region42: #{tpu_custom_call.1} parent=5 // pred_check_branch
        %219 = sbr.rel (%p217) target = $region44
      $region43: #{tpu_custom_call.1} parent=5 // pred_region
        %s220 = ssub.s32 %s12, 2
        // Predicated region
        $region45: #{tpu_custom_call.1} parent=43 // pred_check
          %p221 = pneg %p88
        $region46: #{tpu_custom_call.1} parent=43 // pred_check_branch
          %223 = sbr.rel (%p221) target = $region48
        $region47: #{tpu_custom_call.1} parent=43 // pred_region
          %p224 = scmp.lt.s32.totalorder %s18, 1
          %s225 = scalar_select %p224, %s18, 1
          %s226 = smul.addr %s225, 2
          %s227 = smul.addr %s226, 8
          %s228 = scalar_lea.vmem %s2, %s227
        $region48: #{tpu_custom_call.1} parent=43 // pred_fallthru
          _
      $region44: #{tpu_custom_call.1} parent=5 // pred_fallthru
        _
    $region6: #{tpu_custom_call.1} parent=1 // loop_footer
      %s16 = sadd.s32 1, %s12
    $region7: #{tpu_custom_call.1} parent=1 // loop_footer_branch
      %11 = sbr.rel target = $region3
    $region8: #{tpu_custom_call.1} parent=1 // loop_exit
      _
    %229 = vsyncpa [#allocation3], 1
    %s230 = scalar_lea.sflag [#allocation3], 1
    %231 = vsyncpa %s230, 1
    %232 = vsyncpa [#allocation5], 1

</llo_original>
